<compile_context>
chip_gen: v7x
topology: tpu7x:2x2x1
jax: 0.10.0
libtpu: 0.0.40
codegen_flags: <defaults>
</compile_context>

<pallas_src>
import functools
import math

import jax
import jax.numpy as jnp
from jax import lax
from jax.experimental import pallas as pl
from jax.experimental.pallas import tpu as pltpu


_TRANSCENDENTAL_TYPES = (
    "gaussian", "poisson_one", "poisson_two", "matern32", "matern52",
    "multiquadric", "inverse_multiquadric", "spline",
)


def _rbf_kernel(d_ref, o_ref, *, gamma, vmin, step, rbf_type):
    """d_ref: (tile_n, 1) distances; o_ref: (tile_n, bins) output block."""
    bins = o_ref.shape[1]

    # Fold gamma into the column (tile_n ops) and into the center row (bins ops)
    # instead of multiplying the full (tile_n, bins) block.
    gd = d_ref[...].astype(jnp.float32) * gamma                      # (tile_n, 1)

    # Gamma-scaled centers along the lane axis: c'[j] = gamma*(vmin + j*step).
    # Rebuilt per grid step on purpose — it is a single (1, bins) row, and a
    # persistent scratch filled under pl.when(program_id(0)==0) would be left
    # uninitialized on the second TensorCore when the grid axis is "parallel".
    j = lax.broadcasted_iota(jnp.int32, (1, bins), 1).astype(jnp.float32)
    c = gamma * vmin + (gamma * step) * j                            # (1, bins)

    base = gd - c                                                    # (tile_n, bins)

    if rbf_type == "gaussian":
        out = jnp.exp(-(base * base))
    elif rbf_type == "quadratic":
        out = base * base
    elif rbf_type == "linear":
        out = base
    elif rbf_type == "inverse_quadratic":
        out = 1.0 / (1.0 + base * base)
    elif rbf_type == "multiquadric":
        out = jnp.sqrt(1.0 + base * base)
    elif rbf_type == "inverse_multiquadric":
        out = lax.rsqrt(1.0 + base * base)
    elif rbf_type == "spline":
        # Faithful to the PyTorch module: NaN whenever base <= -1 (same there).
        out = base * base * jnp.log(base + 1.0)
    elif rbf_type == "poisson_one":
        out = (base - 1.0) * jnp.exp(-base)
    elif rbf_type == "poisson_two":
        out = (base - 2.0) / 2.0 * base * jnp.exp(-base)
    elif rbf_type == "matern32":
        s3 = math.sqrt(3.0)
        out = (1.0 + s3 * base) * jnp.exp(-s3 * base)
    elif rbf_type == "matern52":
        s5 = math.sqrt(5.0)
        out = (1.0 + s5 * base + (5.0 / 3.0) * (base * base)) * jnp.exp(-s5 * base)
    else:
        raise Exception("No Implemented Radial Basis Method")

    o_ref[...] = out.astype(o_ref.dtype)


def _round_up(x, m):
    return ((x + m - 1) // m) * m


def rbf_expansion(distance, *, vmin=0.0, vmax=8.0, bins=40, lengthscale=None,
                  rbf_type="gaussian", tile_n=8192, out_dtype=jnp.float32):
    """Pallas implementation of RBFExpansion.forward.

    distance: array of interatomic distances, any shape.
    Returns distance.shape + (bins,) array of dtype `out_dtype`, directly in the
    PyTorch layout (no post-kernel transpose).

    Notes:
      * gamma convention mirrors the module: 1/step if lengthscale is None,
        else 1/lengthscale**2.
      * bins must be >= 2 when lengthscale is None (step would be 0 otherwise).
      * centers are vmin + i*step in f32 (may differ from torch.linspace by ulps).
    """
    distance = jnp.asarray(distance)
    orig_shape = distance.shape
    d_flat = distance.reshape(-1).astype(jnp.float32)
    n = int(d_flat.shape[0])
    if n == 0:
        return jnp.zeros(orig_shape + (bins,), dtype=out_dtype)

    if lengthscale is None:
        if bins < 2:
            raise ValueError("bins must be >= 2 when lengthscale is None")
        step = (vmax - vmin) / (bins - 1)
        gamma = 1.0 / step                       # == 1 / diff(centers).mean()
    else:
        step = (vmax - vmin) / (bins - 1) if bins > 1 else 0.0
        gamma = 1.0 / (lengthscale ** 2)         # module convention, by fidelity

    # --- N-axis tiling: rows on sublanes, bins on lanes -----------------------
    SUB = 32                                     # covers f32 / bf16 / int8 packing
    n_ceil = _round_up(n, SUB)
    tile_n = _round_up(max(int(tile_n), SUB), SUB)
    tile_n = min(tile_n, n_ceil)
    # Keep the grid >= 2 steps for moderately large N so both TensorCores on a
    # v7x chip get work (axis is marked "parallel").
    if tile_n >= n_ceil and n_ceil >= 1024:
        tile_n = _round_up(pl.cdiv(n_ceil, 2), SUB)
    grid_n = pl.cdiv(n, tile_n)
    n_pad = grid_n * tile_n

    d2 = d_flat
    if n_pad != n:
        # Padded tail rows may produce NaN/Inf for some rbf types (e.g. spline);
        # they are sliced off below and never participate in any reduction.
        d2 = jnp.pad(d2, (0, n_pad - n))
    d2 = d2.reshape(n_pad, 1)

    kernel = functools.partial(
        _rbf_kernel, gamma=float(gamma), vmin=float(vmin), step=float(step),
        rbf_type=rbf_type)

    out_itemsize = jnp.dtype(out_dtype).itemsize
    cost = pl.CostEstimate(
        flops=8 * n_pad * bins,
        transcendentals=(n_pad * bins) if rbf_type in _TRANSCENDENTAL_TYPES else 0,
        bytes_accessed=4 * n_pad + out_itemsize * n_pad * bins,
    )

    out = pl.pallas_call(
        kernel,
        out_shape=jax.ShapeDtypeStruct((n_pad, bins), out_dtype),
        grid_spec=pltpu.PrefetchScalarGridSpec(
            num_scalar_prefetch=0,
            grid=(grid_n,),
            in_specs=[pl.BlockSpec((tile_n, 1), lambda i: (i, 0))],
            out_specs=pl.BlockSpec((tile_n, bins), lambda i: (i, 0)),
        ),
        compiler_params=pltpu.CompilerParams(
            dimension_semantics=("parallel",),
            # Lane-padded (bins 40 -> 128) VMEM blocks: ~16 MiB double-buffered
            # at tile_n=8192 f32, above v5e's 16 MiB scoped default.
            vmem_limit_bytes=32 * 1024 * 1024,
        ),
        cost_estimate=cost,
    )(d2)

    return out[:n].reshape(orig_shape + (bins,))


# TODO(synk): when RBFExpansion feeds a Linear(bins->D) (usual potnet pattern),
# fuse the expansion into that matmul kernel so the (N, bins) slab never hits HBM.


def _reference(distance, *, vmin=0.0, vmax=8.0, bins=40, lengthscale=None,
               rbf_type="gaussian"):
    step = (vmax - vmin) / (bins - 1)
    centers = vmin + step * jnp.arange(bins, dtype=jnp.float32)
    gamma = (1.0 / step) if lengthscale is None else 1.0 / (lengthscale ** 2)
    base = gamma * (distance[..., None].astype(jnp.float32) - centers)
    if rbf_type == "gaussian":
        return jnp.exp(-(base ** 2))
    if rbf_type == "quadratic":
        return base ** 2
    if rbf_type == "linear":
        return base
    if rbf_type == "inverse_quadratic":
        return 1.0 / (1.0 + base ** 2)
    if rbf_type == "multiquadric":
        return jnp.sqrt(1.0 + base ** 2)
    if rbf_type == "inverse_multiquadric":
        return 1.0 / jnp.sqrt(1.0 + base ** 2)
    if rbf_type == "poisson_one":
        return (base - 1.0) * jnp.exp(-base)
    if rbf_type == "matern32":
        s3 = math.sqrt(3.0)
        return (1.0 + s3 * base) * jnp.exp(-s3 * base)
    raise ValueError(rbf_type)


if __name__ == "__main__":
    key = jax.random.PRNGKey(0)
    BINS = 40
    N = 300                         # small edge count, like a small crystal graph
    d = jax.random.uniform(key, (N,), dtype=jnp.float32, minval=0.0, maxval=8.0)

    checks = []

    # 1) Several RBF types, default (single-tile) path.
    for rbf_type, rtol in [("gaussian", 1e-4), ("quadratic", 1e-4),
                           ("inverse_quadratic", 1e-4),
                           ("inverse_multiquadric", 1e-3),
                           ("multiquadric", 1e-4)]:
        out = jax.block_until_ready(
            rbf_expansion(d, vmin=0.0, vmax=8.0, bins=BINS, rbf_type=rbf_type))
        ref = _reference(d, vmin=0.0, vmax=8.0, bins=BINS, rbf_type=rbf_type)
        checks.append(out.shape == (N, BINS))
        checks.append(bool(jnp.allclose(out, ref, rtol=rtol, atol=1e-5)))

    # 2) Multi-tile + ragged padding path (tile_n forced small).
    out = jax.block_until_ready(
        rbf_expansion(d, bins=BINS, rbf_type="gaussian", tile_n=64))
    ref = _reference(d, bins=BINS, rbf_type="gaussian")
    checks.append(out.shape == (N, BINS))
    checks.append(bool(jnp.allclose(out, ref, rtol=1e-4, atol=1e-5)))

    # 3) Explicit lengthscale branch (gamma = 1/lengthscale**2) + exp-family type.
    out = jax.block_until_ready(
        rbf_expansion(d, bins=BINS, lengthscale=1.5, rbf_type="matern32"))
    ref = _reference(d, bins=BINS, lengthscale=1.5, rbf_type="matern32")
    checks.append(bool(jnp.allclose(out, ref, rtol=1e-4, atol=1e-5)))

    # 4) Arbitrary leading shape, like distance of shape (batch, edges).
    d2 = jax.random.uniform(jax.random.PRNGKey(1), (2, 150), dtype=jnp.float32,
                            minval=0.0, maxval=8.0)
    out = jax.block_until_ready(rbf_expansion(d2, bins=BINS, rbf_type="gaussian"))
    ref = _reference(d2, bins=BINS, rbf_type="gaussian")
    checks.append(out.shape == (2, 150, BINS))
    checks.append(bool(jnp.allclose(out, ref, rtol=1e-4, atol=1e-5)))

    # 5) bf16 output smoke test (math stays f32, cast only at the store).
    out_bf = jax.block_until_ready(
        rbf_expansion(d, bins=BINS, rbf_type="gaussian", out_dtype=jnp.bfloat16))
    ref = _reference(d, bins=BINS, rbf_type="gaussian")
    checks.append(out_bf.dtype == jnp.bfloat16)
    checks.append(bool(jnp.allclose(out_bf.astype(jnp.float32), ref,
                                    rtol=2e-2, atol=2e-2)))

    assert all(checks), checks
    print("KERNEL_OK")
</pallas_src>

<mosaic_0001>
module attributes {stable_mosaic.version = 11 : i64} {
  func.func @_rbf_kernel(%arg0: i32, %arg1: memref<320x1xf32, #tpu.memory_space<vmem>>, %arg2: memref<320x40xf32, #tpu.memory_space<vmem>>) attributes {dimension_semantics = [#tpu.dimension_semantics<parallel>], iteration_bounds = array<i64: 1>, scalar_prefetch = 0 : i64, scratch_operands = 0 : i64, tpu.core_type = #tpu.core_type<tc>, window_params = [{transform_indices = @transform_0, window_bounds = array<i64: 320, 1>}, {transform_indices = @transform_1, window_bounds = array<i64: 320, 40>}]} {
    %c0 = arith.constant 0 : index
    %c0_0 = arith.constant 0 : index
    %0 = vector.load %arg1[%c0, %c0_0] : memref<320x1xf32, #tpu.memory_space<vmem>>, vector<320x1xf32>
    %cst = arith.constant 4.875000e+00 : f32
    %1 = vector.broadcast %cst : f32 to vector<320x1xf32>
    %2 = arith.mulf %0, %1 : vector<320x1xf32>
    %3 = tpu.iota {dimensions = array<i32: 1>} : vector<1x40xi32>
    %4 = arith.sitofp %3 : vector<1x40xi32> to vector<1x40xf32>
    %cst_1 = arith.constant 1.000000e+00 : f32
    %5 = vector.broadcast %cst_1 : f32 to vector<1x40xf32>
    %6 = arith.mulf %5, %4 : vector<1x40xf32>
    %cst_2 = arith.constant 0.000000e+00 : f32
    %7 = vector.broadcast %cst_2 : f32 to vector<1x40xf32>
    %8 = arith.addf %7, %6 : vector<1x40xf32>
    %9 = vector.broadcast %2 : vector<320x1xf32> to vector<320x40xf32>
    %10 = vector.broadcast %8 : vector<1x40xf32> to vector<320x40xf32>
    %11 = arith.subf %9, %10 : vector<320x40xf32>
    %12 = arith.mulf %11, %11 : vector<320x40xf32>
    %cst_3 = arith.constant 0.000000e+00 : f32
    %13 = vector.broadcast %cst_3 : f32 to vector<320x40xf32>
    %14 = arith.subf %13, %12 : vector<320x40xf32>
    %15 = math.exp %14 : vector<320x40xf32>
    %c0_4 = arith.constant 0 : index
    %c0_5 = arith.constant 0 : index
    %16 = vector.load %arg2[%c0_4, %c0_5] : memref<320x40xf32, #tpu.memory_space<vmem>>, vector<320x40xf32>
    tpu.vector_store %arg2[%c0_4, %c0_5], %15 {strides = array<i32>} : memref<320x40xf32, #tpu.memory_space<vmem>>, vector<320x40xf32>,
    return
  }
  func.func @transform_0(%arg0: i32) -> (i32, i32) {
    %c0_i32 = arith.constant 0 : i32
    %c0_i32_0 = arith.constant 0 : i32
    return %arg0, %c0_i32 : i32, i32
  }
  func.func @transform_1(%arg0: i32) -> (i32, i32) {
    %c0_i32 = arith.constant 0 : i32
    %c0_i32_0 = arith.constant 0 : i32
    return %arg0, %c0_i32 : i32, i32
  }
}

</mosaic_0001>

<llo_original>
// kernel: tpu_custom_call.1
$region0: #{tpu_custom_call.1}
  #allocation0 [shape = 'u32[]', space=smem, size = 0x4, offset = 0x4, fixed_abs, tag = 'smem constant byte address 0x4 - core index']
  #allocation1 [shape = 'u32[144,128]{1,0:T(1,128)}', space=vmem, size = 0x12000, scoped, tag = 'internal scratch']
  %s0 = inlined_call_operand.vmem [shape: f32[320,1], index: 0, kind: input, shape index: {}]
  %s1 = inlined_call_operand.vmem [shape: f32[320,40], index: 1, kind: output, shape index: {}]
  %s2 = sld [smem:[#allocation0]]
  $region14: #{tpu_custom_call.1} parent=0
    _
  %s4 = ssub.s32 1, %s2
  %s5 = scalar_select 0, %s4, %s2
  // Predicated region
  $region2: #{tpu_custom_call.1} parent=0 // pred_check
    _
  $region3: #{tpu_custom_call.1} parent=0 // pred_check_branch
    %7 = sbr.rel (0) target = $region5
  $region4: #{tpu_custom_call.1} parent=0 // pred_region
    _
  $region5: #{tpu_custom_call.1} parent=0 // pred_fallthru
    _
  %v8 = vld [vmem:[%s0] sm:$0xff]
  %v9 = vld [vmem:[%s0 + $0x8] sm:$0xff]
  %v10 = vld [vmem:[%s0 + $0x10] sm:$0xff]
  %v11 = vld [vmem:[%s0 + $0x18] sm:$0xff]
  %v12 = vld [vmem:[%s0 + $0x20] sm:$0xff]
  %v13 = vld [vmem:[%s0 + $0x28] sm:$0xff]
  %v14 = vld [vmem:[%s0 + $0x30] sm:$0xff]
  %v15 = vld [vmem:[%s0 + $0x38] sm:$0xff]
  %v16 = vld [vmem:[%s0 + $0x40] sm:$0xff]
  %v17 = vld [vmem:[%s0 + $0x48] sm:$0xff]
  %v18 = vld [vmem:[%s0 + $0x50] sm:$0xff]
  %v19 = vld [vmem:[%s0 + $0x58] sm:$0xff]
  %v20 = vld [vmem:[%s0 + $0x60] sm:$0xff]
  %v21 = vld [vmem:[%s0 + $0x68] sm:$0xff]
  %v22 = vld [vmem:[%s0 + $0x70] sm:$0xff]
  %v23 = vld [vmem:[%s0 + $0x78] sm:$0xff]
  %v24 = vld [vmem:[%s0 + $0x80] sm:$0xff]
  %v25 = vld [vmem:[%s0 + $0x88] sm:$0xff]
  %v26 = vld [vmem:[%s0 + $0x90] sm:$0xff]
  %v27 = vld [vmem:[%s0 + $0x98] sm:$0xff]
  %v28 = vld [vmem:[%s0 + $0xa0] sm:$0xff]
  %v29 = vld [vmem:[%s0 + $0xa8] sm:$0xff]
  %v30 = vld [vmem:[%s0 + $0xb0] sm:$0xff]
  %v31 = vld [vmem:[%s0 + $0xb8] sm:$0xff]
  %v32 = vld [vmem:[%s0 + $0xc0] sm:$0xff]
  %v33 = vld [vmem:[%s0 + $0xc8] sm:$0xff]
  %v34 = vld [vmem:[%s0 + $0xd0] sm:$0xff]
  %v35 = vld [vmem:[%s0 + $0xd8] sm:$0xff]
  %v36 = vld [vmem:[%s0 + $0xe0] sm:$0xff]
  %v37 = vld [vmem:[%s0 + $0xe8] sm:$0xff]
  %v38 = vld [vmem:[%s0 + $0xf0] sm:$0xff]
  %v39 = vld [vmem:[%s0 + $0xf8] sm:$0xff]
  %v40 = vld [vmem:[%s0 + $0x100] sm:$0xff]
  %v41 = vld [vmem:[%s0 + $0x108] sm:$0xff]
  %v42 = vld [vmem:[%s0 + $0x110] sm:$0xff]
  %v43 = vld [vmem:[%s0 + $0x118] sm:$0xff]
  %v44 = vld [vmem:[%s0 + $0x120] sm:$0xff]
  %v45 = vld [vmem:[%s0 + $0x128] sm:$0xff]
  %v46 = vld [vmem:[%s0 + $0x130] sm:$0xff]
  %v47 = vld [vmem:[%s0 + $0x138] sm:$0xff]
  %v48 = vmul.f32 %v8, 4.875
  %v49 = vmul.f32 %v9, 4.875
  %v50 = vmul.f32 %v10, 4.875
  %v51 = vmul.f32 %v11, 4.875
  %v52 = vmul.f32 %v12, 4.875
  %v53 = vmul.f32 %v13, 4.875
  %v54 = vmul.f32 %v14, 4.875
  %v55 = vmul.f32 %v15, 4.875
  %v56 = vmul.f32 %v16, 4.875
  %v57 = vmul.f32 %v17, 4.875
  %v58 = vmul.f32 %v18, 4.875
  %v59 = vmul.f32 %v19, 4.875
  %v60 = vmul.f32 %v20, 4.875
  %v61 = vmul.f32 %v21, 4.875
  %v62 = vmul.f32 %v22, 4.875
  %v63 = vmul.f32 %v23, 4.875
  %v64 = vmul.f32 %v24, 4.875
  %v65 = vmul.f32 %v25, 4.875
  %v66 = vmul.f32 %v26, 4.875
  %v67 = vmul.f32 %v27, 4.875
  %v68 = vmul.f32 %v28, 4.875
  %v69 = vmul.f32 %v29, 4.875
  %v70 = vmul.f32 %v30, 4.875
  %v71 = vmul.f32 %v31, 4.875
  %v72 = vmul.f32 %v32, 4.875
  %v73 = vmul.f32 %v33, 4.875
  %v74 = vmul.f32 %v34, 4.875
  %v75 = vmul.f32 %v35, 4.875
  %v76 = vmul.f32 %v36, 4.875
  %v77 = vmul.f32 %v37, 4.875
  %v78 = vmul.f32 %v38, 4.875
  %v79 = vmul.f32 %v39, 4.875
  %v80 = vmul.f32 %v40, 4.875
  %v81 = vmul.f32 %v41, 4.875
  %v82 = vmul.f32 %v42, 4.875
  %v83 = vmul.f32 %v43, 4.875
  %v84 = vmul.f32 %v44, 4.875
  %v85 = vmul.f32 %v45, 4.875
  %v86 = vmul.f32 %v46, 4.875
  %v87 = vmul.f32 %v47, 4.875
  %v88 = vlaneseq
  %v89 = vand.u32 %v88, 127
  %v90 = vcvt.s32.f32 %v89
  %v91 = vadd.f32 %v90, 0.0
  %93 = vset.pattern.permute.xlu0 0
  %94 = vperm.xlu0 %93, %v48
  %v95 = vpop.permute.xlu0 %94
  %98 = vset.pattern.permute.xlu0 0
  %99 = vperm.xlu0 %98, %v49
  %v100 = vpop.permute.xlu0 %99
  %103 = vset.pattern.permute.xlu0 0
  %104 = vperm.xlu0 %103, %v50
  %v105 = vpop.permute.xlu0 %104
  %108 = vset.pattern.permute.xlu0 0
  %109 = vperm.xlu0 %108, %v51
  %v110 = vpop.permute.xlu0 %109
  %113 = vset.pattern.permute.xlu0 0
  %114 = vperm.xlu0 %113, %v52
  %v115 = vpop.permute.xlu0 %114
  %118 = vset.pattern.permute.xlu0 0
  %119 = vperm.xlu0 %118, %v53
  %v120 = vpop.permute.xlu0 %119
  %123 = vset.pattern.permute.xlu0 0
  %124 = vperm.xlu0 %123, %v54
  %v125 = vpop.permute.xlu0 %124
  %128 = vset.pattern.permute.xlu0 0
  %129 = vperm.xlu0 %128, %v55
  %v130 = vpop.permute.xlu0 %129
  %133 = vset.pattern.permute.xlu0 0
  %134 = vperm.xlu0 %133, %v56
  %v135 = vpop.permute.xlu0 %134
  %138 = vset.pattern.permute.xlu0 0
  %139 = vperm.xlu0 %138, %v57
  %v140 = vpop.permute.xlu0 %139
  %143 = vset.pattern.permute.xlu0 0
  %144 = vperm.xlu0 %143, %v58
  %v145 = vpop.permute.xlu0 %144
  %148 = vset.pattern.permute.xlu0 0
  %149 = vperm.xlu0 %148, %v59
  %v150 = vpop.permute.xlu0 %149
  %153 = vset.pattern.permute.xlu0 0
  %154 = vperm.xlu0 %153, %v60
  %v155 = vpop.permute.xlu0 %154
  %158 = vset.pattern.permute.xlu0 0
  %159 = vperm.xlu0 %158, %v61
  %v160 = vpop.permute.xlu0 %159
  %163 = vset.pattern.permute.xlu0 0
  %164 = vperm.xlu0 %163, %v62
  %v165 = vpop.permute.xlu0 %164
  %168 = vset.pattern.permute.xlu0 0
  %169 = vperm.xlu0 %168, %v63
  %v170 = vpop.permute.xlu0 %169
  %173 = vset.pattern.permute.xlu0 0
  %174 = vperm.xlu0 %173, %v64
  %v175 = vpop.permute.xlu0 %174
  %178 = vset.pattern.permute.xlu0 0
  %179 = vperm.xlu0 %178, %v65
  %v180 = vpop.permute.xlu0 %179
  %183 = vset.pattern.permute.xlu0 0
  %184 = vperm.xlu0 %183, %v66
  %v185 = vpop.permute.xlu0 %184
  %188 = vset.pattern.permute.xlu0 0
  %189 = vperm.xlu0 %188, %v67
  %v190 = vpop.permute.xlu0 %189
  %193 = vset.pattern.permute.xlu0 0
  %194 = vperm.xlu0 %193, %v68
  %v195 = vpop.permute.xlu0 %194
  %198 = vset.pattern.permute.xlu0 0
  %199 = vperm.xlu0 %198, %v69
  %v200 = vpop.permute.xlu0 %199
  %203 = vset.pattern.permute.xlu0 0
  %204 = vperm.xlu0 %203, %v70
  %v205 = vpop.permute.xlu0 %204
  %208 = vset.pattern.permute.xlu0 0
  %209 = vperm.xlu0 %208, %v71
  %v210 = vpop.permute.xlu0 %209
  %213 = vset.pattern.permute.xlu0 0
  %214 = vperm.xlu0 %213, %v72
  %v215 = vpop.permute.xlu0 %214
  %218 = vset.pattern.permute.xlu0 0
  %219 = vperm.xlu0 %218, %v73
  %v220 = vpop.permute.xlu0 %219
  %223 = vset.pattern.permute.xlu0 0
  %224 = vperm.xlu0 %223, %v74
  %v225 = vpop.permute.xlu0 %224
  %228 = vset.pattern.permute.xlu0 0
  %229 = vperm.xlu0 %228, %v75
  %v230 = vpop.permute.xlu0 %229
  %233 = vset.pattern.permute.xlu0 0
  %234 = vperm.xlu0 %233, %v76
  %v235 = vpop.permute.xlu0 %234
  %238 = vset.pattern.permute.xlu0 0
  %239 = vperm.xlu0 %238, %v77
  %v240 = vpop.permute.xlu0 %239
  %243 = vset.pattern.permute.xlu0 0
  %244 = vperm.xlu0 %243, %v78
  %v245 = vpop.permute.xlu0 %244
  %248 = vset.pattern.permute.xlu0 0
  %249 = vperm.xlu0 %248, %v79
  %v250 = vpop.permute.xlu0 %249
  %253 = vset.pattern.permute.xlu0 0
  %254 = vperm.xlu0 %253, %v80
  %v255 = vpop.permute.xlu0 %254
  %258 = vset.pattern.permute.xlu0 0
  %259 = vperm.xlu0 %258, %v81
  %v260 = vpop.permute.xlu0 %259
  %263 = vset.pattern.permute.xlu0 0
  %264 = vperm.xlu0 %263, %v82
  %v265 = vpop.permute.xlu0 %264
  %268 = vset.pattern.permute.xlu0 0
  %269 = vperm.xlu0 %268, %v83
  %v270 = vpop.permute.xlu0 %269
  %273 = vset.pattern.permute.xlu0 0
  %274 = vperm.xlu0 %273, %v84
  %v275 = vpop.permute.xlu0 %274
  %278 = vset.pattern.permute.xlu0 0
  %279 = vperm.xlu0 %278, %v85
  %v280 = vpop.permute.xlu0 %279
  %283 = vset.pattern.permute.xlu0 0
  %284 = vperm.xlu0 %283, %v86
  %v285 = vpop.permute.xlu0 %284
  %288 = vset.pattern.permute.xlu0 0
  %289 = vperm.xlu0 %288, %v87
  %v290 = vpop.permute.xlu0 %289
  %v292 = vsub.f32 %v95, %v91
  %v293 = vsub.f32 %v100, %v91
  %v294 = vsub.f32 %v105, %v91
  %v295 = vsub.f32 %v110, %v91
  %v296 = vsub.f32 %v115, %v91
  %v297 = vsub.f32 %v120, %v91
  %v298 = vsub.f32 %v125, %v91
  %v299 = vsub.f32 %v130, %v91
  %v300 = vsub.f32 %v135, %v91
  %v301 = vsub.f32 %v140, %v91
  %v302 = vsub.f32 %v145, %v91
  %v303 = vsub.f32 %v150, %v91
  %v304 = vsub.f32 %v155, %v91
  %v305 = vsub.f32 %v160, %v91
  %v306 = vsub.f32 %v165, %v91
  %v307 = vsub.f32 %v170, %v91
  %v308 = vsub.f32 %v175, %v91
  %v309 = vsub.f32 %v180, %v91
  %v310 = vsub.f32 %v185, %v91
  %v311 = vsub.f32 %v190, %v91
  %v312 = vsub.f32 %v195, %v91
  %v313 = vsub.f32 %v200, %v91
  %v314 = vsub.f32 %v205, %v91
  %v315 = vsub.f32 %v210, %v91
  %v316 = vsub.f32 %v215, %v91
  %v317 = vsub.f32 %v220, %v91
  %v318 = vsub.f32 %v225, %v91
  %v319 = vsub.f32 %v230, %v91
  %v320 = vsub.f32 %v235, %v91
  %v321 = vsub.f32 %v240, %v91
  %v322 = vsub.f32 %v245, %v91
  %v323 = vsub.f32 %v250, %v91
  %v324 = vsub.f32 %v255, %v91
  %v325 = vsub.f32 %v260, %v91
  %v326 = vsub.f32 %v265, %v91
  %v327 = vsub.f32 %v270, %v91
  %v328 = vsub.f32 %v275, %v91
  %v329 = vsub.f32 %v280, %v91
  %v330 = vsub.f32 %v285, %v91
  %v331 = vsub.f32 %v290, %v91
  %v332 = vmul.f32 %v292, %v292
  %v333 = vmul.f32 %v293, %v293
  %v334 = vmul.f32 %v294, %v294
  %v335 = vmul.f32 %v295, %v295
  %v336 = vmul.f32 %v296, %v296
  %v337 = vmul.f32 %v297, %v297
  %v338 = vmul.f32 %v298, %v298
  %v339 = vmul.f32 %v299, %v299
  %v340 = vmul.f32 %v300, %v300
  %v341 = vmul.f32 %v301, %v301
  %v342 = vmul.f32 %v302, %v302
  %v343 = vmul.f32 %v303, %v303
  %v344 = vmul.f32 %v304, %v304
  %v345 = vmul.f32 %v305, %v305
  %v346 = vmul.f32 %v306, %v306
  %v347 = vmul.f32 %v307, %v307
  %v348 = vmul.f32 %v308, %v308
  %v349 = vmul.f32 %v309, %v309
  %v350 = vmul.f32 %v310, %v310
  %v351 = vmul.f32 %v311, %v311
  %v352 = vmul.f32 %v312, %v312
  %v353 = vmul.f32 %v313, %v313
  %v354 = vmul.f32 %v314, %v314
  %v355 = vmul.f32 %v315, %v315
  %v356 = vmul.f32 %v316, %v316
  %v357 = vmul.f32 %v317, %v317
  %v358 = vmul.f32 %v318, %v318
  %v359 = vmul.f32 %v319, %v319
  %v360 = vmul.f32 %v320, %v320
  %v361 = vmul.f32 %v321, %v321
  %v362 = vmul.f32 %v322, %v322
  %v363 = vmul.f32 %v323, %v323
  %v364 = vmul.f32 %v324, %v324
  %v365 = vmul.f32 %v325, %v325
  %v366 = vmul.f32 %v326, %v326
  %v367 = vmul.f32 %v327, %v327
  %v368 = vmul.f32 %v328, %v328
  %v369 = vmul.f32 %v329, %v329
  %v370 = vmul.f32 %v330, %v330
  %v371 = vmul.f32 %v331, %v331
  %v372 = vsub.f32 0.0, %v332
  %v373 = vsub.f32 0.0, %v333
  %v374 = vsub.f32 0.0, %v334
  %v375 = vsub.f32 0.0, %v335
  %v376 = vsub.f32 0.0, %v336
  %v377 = vsub.f32 0.0, %v337
  %v378 = vsub.f32 0.0, %v338
  %v379 = vsub.f32 0.0, %v339
  %v380 = vsub.f32 0.0, %v340
  %v381 = vsub.f32 0.0, %v341
  %v382 = vsub.f32 0.0, %v342
  %v383 = vsub.f32 0.0, %v343
  %v384 = vsub.f32 0.0, %v344
  %v385 = vsub.f32 0.0, %v345
  %v386 = vsub.f32 0.0, %v346
  %v387 = vsub.f32 0.0, %v347
  %v388 = vsub.f32 0.0, %v348
  %v389 = vsub.f32 0.0, %v349
  %v390 = vsub.f32 0.0, %v350
  %v391 = vsub.f32 0.0, %v351
  %v392 = vsub.f32 0.0, %v352
  %v393 = vsub.f32 0.0, %v353
  %v394 = vsub.f32 0.0, %v354
  %v395 = vsub.f32 0.0, %v355
  %v396 = vsub.f32 0.0, %v356
  %v397 = vsub.f32 0.0, %v357
  %v398 = vsub.f32 0.0, %v358
  %v399 = vsub.f32 0.0, %v359
  %v400 = vsub.f32 0.0, %v360
  %v401 = vsub.f32 0.0, %v361
  %v402 = vsub.f32 0.0, %v362
  %v403 = vsub.f32 0.0, %v363
  %v404 = vsub.f32 0.0, %v364
  %v405 = vsub.f32 0.0, %v365
  %v406 = vsub.f32 0.0, %v366
  %v407 = vsub.f32 0.0, %v367
  %v408 = vsub.f32 0.0, %v368
  %v409 = vsub.f32 0.0, %v369
  %v410 = vsub.f32 0.0, %v370
  %v411 = vsub.f32 0.0, %v371
  %v412 = vmul.f32 %v372, 1.442695
  %v413 = vpow.pop %v412
  %v414 = vmul.f32 %v373, 1.442695
  %v415 = vpow.pop %v414
  %v416 = vmul.f32 %v374, 1.442695
  %v417 = vpow.pop %v416
  %v418 = vmul.f32 %v375, 1.442695
  %v419 = vpow.pop %v418
  %v420 = vmul.f32 %v376, 1.442695
  %v421 = vpow.pop %v420
  %v422 = vmul.f32 %v377, 1.442695
  %v423 = vpow.pop %v422
  %v424 = vmul.f32 %v378, 1.442695
  %v425 = vpow.pop %v424
  %v426 = vmul.f32 %v379, 1.442695
  %v427 = vpow.pop %v426
  %v428 = vmul.f32 %v380, 1.442695
  %v429 = vpow.pop %v428
  %v430 = vmul.f32 %v381, 1.442695
  %v431 = vpow.pop %v430
  %v432 = vmul.f32 %v382, 1.442695
  %v433 = vpow.pop %v432
  %v434 = vmul.f32 %v383, 1.442695
  %v435 = vpow.pop %v434
  %v436 = vmul.f32 %v384, 1.442695
  %v437 = vpow.pop %v436
  %v438 = vmul.f32 %v385, 1.442695
  %v439 = vpow.pop %v438
  %v440 = vmul.f32 %v386, 1.442695
  %v441 = vpow.pop %v440
  %v442 = vmul.f32 %v387, 1.442695
  %v443 = vpow.pop %v442
  %v444 = vmul.f32 %v388, 1.442695
  %v445 = vpow.pop %v444
  %v446 = vmul.f32 %v389, 1.442695
  %v447 = vpow.pop %v446
  %v448 = vmul.f32 %v390, 1.442695
  %v449 = vpow.pop %v448
  %v450 = vmul.f32 %v391, 1.442695
  %v451 = vpow.pop %v450
  %v452 = vmul.f32 %v392, 1.442695
  %v453 = vpow.pop %v452
  %v454 = vmul.f32 %v393, 1.442695
  %v455 = vpow.pop %v454
  %v456 = vmul.f32 %v394, 1.442695
  %v457 = vpow.pop %v456
  %v458 = vmul.f32 %v395, 1.442695
  %v459 = vpow.pop %v458
  %v460 = vmul.f32 %v396, 1.442695
  %v461 = vpow.pop %v460
  %v462 = vmul.f32 %v397, 1.442695
  %v463 = vpow.pop %v462
  %v464 = vmul.f32 %v398, 1.442695
  %v465 = vpow.pop %v464
  %v466 = vmul.f32 %v399, 1.442695
  %v467 = vpow.pop %v466
  %v468 = vmul.f32 %v400, 1.442695
  %v469 = vpow.pop %v468
  %v470 = vmul.f32 %v401, 1.442695
  %v471 = vpow.pop %v470
  %v472 = vmul.f32 %v402, 1.442695
  %v473 = vpow.pop %v472
  %v474 = vmul.f32 %v403, 1.442695
  %v475 = vpow.pop %v474
  %v476 = vmul.f32 %v404, 1.442695
  %v477 = vpow.pop %v476
  %v478 = vmul.f32 %v405, 1.442695
  %v479 = vpow.pop %v478
  %v480 = vmul.f32 %v406, 1.442695
  %v481 = vpow.pop %v480
  %v482 = vmul.f32 %v407, 1.442695
  %v483 = vpow.pop %v482
  %v484 = vmul.f32 %v408, 1.442695
  %v485 = vpow.pop %v484
  %v486 = vmul.f32 %v409, 1.442695
  %v487 = vpow.pop %v486
  %v488 = vmul.f32 %v410, 1.442695
  %v489 = vpow.pop %v488
  %v490 = vmul.f32 %v411, 1.442695
  %v491 = vpow.pop %v490
  %vm492 = vcmask 326656
  %493 = vst.msk [vmem:[%s1] sm:$0xff] %vm492, %v413
  %494 = vst.msk [vmem:[%s1 + $0x8] sm:$0xff] %vm492, %v415
  %495 = vst.msk [vmem:[%s1 + $0x10] sm:$0xff] %vm492, %v417
  %496 = vst.msk [vmem:[%s1 + $0x18] sm:$0xff] %vm492, %v419
  %497 = vst.msk [vmem:[%s1 + $0x20] sm:$0xff] %vm492, %v421
  %498 = vst.msk [vmem:[%s1 + $0x28] sm:$0xff] %vm492, %v423
  %499 = vst.msk [vmem:[%s1 + $0x30] sm:$0xff] %vm492, %v425
  %500 = vst.msk [vmem:[%s1 + $0x38] sm:$0xff] %vm492, %v427
  %501 = vst.msk [vmem:[%s1 + $0x40] sm:$0xff] %vm492, %v429
  %502 = vst.msk [vmem:[%s1 + $0x48] sm:$0xff] %vm492, %v431
  %503 = vst.msk [vmem:[%s1 + $0x50] sm:$0xff] %vm492, %v433
  %504 = vst.msk [vmem:[%s1 + $0x58] sm:$0xff] %vm492, %v435
  %505 = vst.msk [vmem:[%s1 + $0x60] sm:$0xff] %vm492, %v437
  %506 = vst.msk [vmem:[%s1 + $0x68] sm:$0xff] %vm492, %v439
  %507 = vst.msk [vmem:[%s1 + $0x70] sm:$0xff] %vm492, %v441
  %508 = vst.msk [vmem:[%s1 + $0x78] sm:$0xff] %vm492, %v443
  %509 = vst.msk [vmem:[%s1 + $0x80] sm:$0xff] %vm492, %v445
  %510 = vst.msk [vmem:[%s1 + $0x88] sm:$0xff] %vm492, %v447
  %511 = vst.msk [vmem:[%s1 + $0x90] sm:$0xff] %vm492, %v449
  %512 = vst.msk [vmem:[%s1 + $0x98] sm:$0xff] %vm492, %v451
  %513 = vst.msk [vmem:[%s1 + $0xa0] sm:$0xff] %vm492, %v453
  %514 = vst.msk [vmem:[%s1 + $0xa8] sm:$0xff] %vm492, %v455
  %515 = vst.msk [vmem:[%s1 + $0xb0] sm:$0xff] %vm492, %v457
  %516 = vst.msk [vmem:[%s1 + $0xb8] sm:$0xff] %vm492, %v459
  %517 = vst.msk [vmem:[%s1 + $0xc0] sm:$0xff] %vm492, %v461
  %518 = vst.msk [vmem:[%s1 + $0xc8] sm:$0xff] %vm492, %v463
  %519 = vst.msk [vmem:[%s1 + $0xd0] sm:$0xff] %vm492, %v465
  %520 = vst.msk [vmem:[%s1 + $0xd8] sm:$0xff] %vm492, %v467
  %521 = vst.msk [vmem:[%s1 + $0xe0] sm:$0xff] %vm492, %v469
  %522 = vst.msk [vmem:[%s1 + $0xe8] sm:$0xff] %vm492, %v471
  %523 = vst.msk [vmem:[%s1 + $0xf0] sm:$0xff] %vm492, %v473
  %524 = vst.msk [vmem:[%s1 + $0xf8] sm:$0xff] %vm492, %v475
  %525 = vst.msk [vmem:[%s1 + $0x100] sm:$0xff] %vm492, %v477
  %526 = vst.msk [vmem:[%s1 + $0x108] sm:$0xff] %vm492, %v479
  %527 = vst.msk [vmem:[%s1 + $0x110] sm:$0xff] %vm492, %v481
  %528 = vst.msk [vmem:[%s1 + $0x118] sm:$0xff] %vm492, %v483
  %529 = vst.msk [vmem:[%s1 + $0x120] sm:$0xff] %vm492, %v485
  %530 = vst.msk [vmem:[%s1 + $0x128] sm:$0xff] %vm492, %v487
  %531 = vst.msk [vmem:[%s1 + $0x130] sm:$0xff] %vm492, %v489
  %532 = vst.msk [vmem:[%s1 + $0x138] sm:$0xff] %vm492, %v491
  // Predicated region
  $region6: #{tpu_custom_call.1} parent=0 // pred_check
    _
  $region7: #{tpu_custom_call.1} parent=0 // pred_check_branch
    %534 = sbr.rel (0) target = $region9
  $region8: #{tpu_custom_call.1} parent=0 // pred_region
    _
  $region9: #{tpu_custom_call.1} parent=0 // pred_fallthru
    _
  // Predicated region
  $region10: #{tpu_custom_call.1} parent=0 // pred_check
    _
  $region11: #{tpu_custom_call.1} parent=0 // pred_check_branch
    %536 = sbr.rel (0) target = $region13
  $region12: #{tpu_custom_call.1} parent=0 // pred_region
    _
  $region13: #{tpu_custom_call.1} parent=0 // pred_fallthru
    _

</llo_original>
